<compile_context>
chip_gen: v7x
topology: tpu7x:2x2x1
jax: 0.10.0
libtpu: 0.0.40
codegen_flags: <defaults>
</compile_context>

<pallas_src>
import math

import jax
import jax.numpy as jnp
from jax.experimental import pallas as pl
from jax.experimental.pallas import tpu as pltpu


def _sublane_multiple(dtype) -> int:
    # Sublane packing: 8 for 4-byte, 16 for 2-byte, 32 for 1-byte dtypes.
    itemsize = jnp.dtype(dtype).itemsize
    return max(8, 32 // max(itemsize, 1))


def _make_dma_copy_kernel(chunks):
    """Build a gridless kernel issuing one HBM->HBM DMA per static chunk.

    `chunks` is a static tuple of (start_row, n_rows); all copies are started
    before any wait, so they are all in flight on the DMA engines.
    """

    def kernel(x_hbm, o_hbm, sems):
        copies = []
        for idx, (start, rows) in enumerate(chunks):
            cp = pltpu.make_async_copy(
                x_hbm.at[pl.ds(start, rows)],
                o_hbm.at[pl.ds(start, rows)],
                sems.at[idx],
            )
            cp.start()
            copies.append(cp)
        for cp in copies:
            cp.wait()

    return kernel


def flatten_pallas(
    x: jax.Array,
    *,
    zero_copy: bool = True,                    # flatten is metadata-only
    target_chunk_bytes: int = 8 * 1024 * 1024, # ~8 MiB per DMA descriptor
    max_chunks: int = 64,                      # cap on outstanding DMAs
) -> jax.Array:
    """Equivalent of torch `x.view(N, -1)` for a contiguous tensor.

    zero_copy=True  -> pure reshape (no HBM traffic; preferred).
    zero_copy=False -> materialize a fresh buffer via an HBM->HBM DMA kernel.
    """
    N = x.shape[0] if x.ndim >= 1 else 1
    F = math.prod(x.shape[1:]) if x.ndim > 1 else 1
    total = N * F
    itemsize = jnp.dtype(x.dtype).itemsize

    # Zero-copy path: the flatten itself never needs data movement.
    if zero_copy or total == 0:
        return jnp.reshape(x, (N, F))

    # ---- present the buffer as a lane-dense (R, L) slab when possible ----
    L = None
    for cand in (2048, 1024, 512, 256, 128):
        if total % cand == 0:
            L = cand
            break
    if L is None:
        # Not 128-divisible: still a perfectly valid (if less dense) DMA shape.
        R, L = N, F
    else:
        R = total // L

    slab = jnp.reshape(x, (R, L))

    # ---- split rows into ~target_chunk_bytes DMA chunks (sublane-aligned) ----
    s = _sublane_multiple(x.dtype)
    row_bytes = L * itemsize
    chunk_rows = max(1, target_chunk_bytes // row_bytes)
    if chunk_rows >= s:
        chunk_rows = (chunk_rows // s) * s
    chunk_rows = min(chunk_rows, R)
    n_chunks = pl.cdiv(R, chunk_rows)
    if n_chunks > max_chunks:
        chunk_rows = pl.cdiv(R, max_chunks)
        chunk_rows = ((chunk_rows + s - 1) // s) * s
        chunk_rows = min(chunk_rows, R)

    chunks = []
    start = 0
    while start < R:
        rows = min(chunk_rows, R - start)
        chunks.append((start, rows))
        start += rows
    chunks = tuple(chunks)

    out_slab = pl.pallas_call(
        _make_dma_copy_kernel(chunks),
        out_shape=jax.ShapeDtypeStruct((R, L), x.dtype),
        in_specs=[pl.BlockSpec(memory_space=pl.ANY)],   # raw HBM ref, no auto-DMA
        out_specs=pl.BlockSpec(memory_space=pl.ANY),    # written only via DMA
        scratch_shapes=[pltpu.SemaphoreType.DMA((len(chunks),))],
        cost_estimate=pl.CostEstimate(
            flops=0,
            transcendentals=0,
            bytes_accessed=2 * total * itemsize,
        ),
    )(slab)

    return jnp.reshape(out_slab, (N, F))


if __name__ == "__main__":
    key = jax.random.PRNGKey(0)
    # NCHW input: batch=2, channels=4, spatial=16x16.
    x = jax.random.normal(key, (2, 4, 16, 16), dtype=jnp.float32)

    # Pallas HBM->HBM DMA copy path (fresh output buffer).
    flatten_copy = jax.jit(lambda a: flatten_pallas(a, zero_copy=False))
    y = jax.block_until_ready(flatten_copy(x))

    # Zero-copy (metadata-only) path — the preferred default.
    flatten_view = jax.jit(lambda a: flatten_pallas(a, zero_copy=True))
    y_view = jax.block_until_ready(flatten_view(x))

    # Reference check against plain reshape (== torch .view semantics).
    ref = jnp.reshape(x, (x.shape[0], -1))
    assert y.shape == (2, 4 * 16 * 16), y.shape
    assert jnp.array_equal(y, ref), "mismatch vs reference flatten (kernel path)"
    assert jnp.array_equal(y_view, ref), "mismatch vs reference flatten (view path)"

    print("KERNEL_OK")
</pallas_src>

<mosaic_0001>
module attributes {stable_mosaic.version = 11 : i64} {
  func.func @kernel(%arg0: memref<1x2048xf32, #tpu.memory_space<any>>, %arg1: memref<1x2048xf32, #tpu.memory_space<any>>, %arg2: memref<1x!tpu.dma_semaphore, #tpu.memory_space<semaphore_mem>>) attributes {dimension_semantics = [], scalar_prefetch = 0 : i64, scratch_operands = 1 : i64, tpu.core_type = #tpu.core_type<tc>} {
    %c0_i32 = arith.constant 0 : i32
    %c0_i32_0 = arith.constant 0 : i32
    %c0_i32_1 = arith.constant 0 : i32
    %0 = tpu.memref_slice %arg0[%c0_i32_0, %c0_i32_1] : memref<1x2048xf32, #tpu.memory_space<any>> -> memref<1x2048xf32, #tpu.memory_space<any>>
    %c0_i32_2 = arith.constant 0 : i32
    %c0_i32_3 = arith.constant 0 : i32
    %1 = tpu.memref_slice %arg1[%c0_i32_2, %c0_i32_3] : memref<1x2048xf32, #tpu.memory_space<any>> -> memref<1x2048xf32, #tpu.memory_space<any>>
    %2 = tpu.memref_slice %arg2[%c0_i32] : memref<1x!tpu.dma_semaphore, #tpu.memory_space<semaphore_mem>> -> memref<1x!tpu.dma_semaphore, #tpu.memory_space<semaphore_mem>>
    %3 = tpu.memref_squeeze %2 : memref<1x!tpu.dma_semaphore, #tpu.memory_space<semaphore_mem>> -> memref<!tpu.dma_semaphore, #tpu.memory_space<semaphore_mem>>
    tpu.enqueue_dma source(%0 : memref<1x2048xf32, #tpu.memory_space<any>>) target(%1 : memref<1x2048xf32, #tpu.memory_space<any>>) target_semaphore(%3 : memref<!tpu.dma_semaphore, #tpu.memory_space<semaphore_mem>>)
    %c0_i32_4 = arith.constant 0 : i32
    %c0_i32_5 = arith.constant 0 : i32
    %c0_i32_6 = arith.constant 0 : i32
    %4 = tpu.memref_slice %arg0[%c0_i32_5, %c0_i32_6] : memref<1x2048xf32, #tpu.memory_space<any>> -> memref<1x2048xf32, #tpu.memory_space<any>>
    %c0_i32_7 = arith.constant 0 : i32
    %c0_i32_8 = arith.constant 0 : i32
    %5 = tpu.memref_slice %arg1[%c0_i32_7, %c0_i32_8] : memref<1x2048xf32, #tpu.memory_space<any>> -> memref<1x2048xf32, #tpu.memory_space<any>>
    %6 = tpu.memref_slice %arg2[%c0_i32_4] : memref<1x!tpu.dma_semaphore, #tpu.memory_space<semaphore_mem>> -> memref<1x!tpu.dma_semaphore, #tpu.memory_space<semaphore_mem>>
    %7 = tpu.memref_squeeze %6 : memref<1x!tpu.dma_semaphore, #tpu.memory_space<semaphore_mem>> -> memref<!tpu.dma_semaphore, #tpu.memory_space<semaphore_mem>>
    tpu.wait_dma2 semaphore(%7 : memref<!tpu.dma_semaphore, #tpu.memory_space<semaphore_mem>>) src(%4 : memref<1x2048xf32, #tpu.memory_space<any>>) dst(%5 : memref<1x2048xf32, #tpu.memory_space<any>>)
    return
  }
}

</mosaic_0001>

<llo_original>
// kernel: _lambda_.1
$region0: #{_lambda_.1}
  #allocation0 [shape = 'u32[]', space=smem, size = 0x4, offset = 0x4, fixed_abs, tag = 'smem constant byte address 0x4 - core index']
  #allocation1 [shape = 'u32[144,128]{1,0:T(1,128)}', space=vmem, size = 0x12000, scoped, tag = 'internal scratch']
  #allocation2 [shape = 's32[1]{0}', space=sflag, size = 0x4, scoped, tag = 'scratch operand']
  #allocation3 [shape = 's32[]', space=sflag, size = 0x4, offset = 0, fixed_abs, tag = 'sflag constant byte address 0x0 - dummy sync flag']
  %s0 = inlined_call_operand.vmem [shape: f32[1,2048], index: 0, kind: input, shape index: {}]
  %s1 = inlined_call_operand.vmem [shape: f32[1,2048], index: 1, kind: output, shape index: {}]
  %s2 = sld [smem:[#allocation0]]
  $region36: #{_lambda_.1} parent=0
    _
  %s4 = ssub.s32 1, %s2
  %s5 = scalar_select 0, %s4, %s2
  %p7 = scmp.lt.u32.totalorder 16, 8
  %p8 = pneg %p7
  // Predicated region
  $region2: #{_lambda_.1} parent=0 // pred_check
    _
  $region3: #{_lambda_.1} parent=0 // pred_check_branch
    %10 = sbr.rel (%p7) target = $region5
  $region4: #{_lambda_.1} parent=0 // pred_region
    %s25 = sand.u32 16, 7
    %p26 = scmp.eq.s32.totalorder %s25, 0
    // Predicated region
    $region17: #{_lambda_.1} parent=4 // pred_check
      %p27 = pneg %p26
    $region18: #{_lambda_.1} parent=4 // pred_check_branch
      %29 = sbr.rel (%p27) target = $region20
    $region19: #{_lambda_.1} parent=4 // pred_region
      loop: start=0, step=1, limit=1
      $region21: #{_lambda_.1} parent=19 // loop_pre_header
        _
      $region22: #{_lambda_.1} parent=19 // loop_header
        %s31 = sphi 0, %s35
        %p32 = scmp.ge.s32.totalorder %s31, 1
        %s36 = sphi %s0, %s0
        %s37 = sphi %s1, %s1
      $region23: #{_lambda_.1} parent=19 // loop_header_branch
        %34 = sbr.rel (%p32) target = $region27
      $region24: #{_lambda_.1} parent=19 // loop_body
        %v38 = vld [vmem:[%s36] sm:$0xff]
        %39 = vst [vmem:[%s37] sm:$0xff] %v38
        %v40 = vld [vmem:[%s36 + $0x8] sm:$0xff]
        %41 = vst [vmem:[%s37 + $0x8] sm:$0xff] %v40
      $region25: #{_lambda_.1} parent=19 // loop_footer
        %s35 = sadd.s32 1, %s31
      $region26: #{_lambda_.1} parent=19 // loop_footer_branch
        %30 = sbr.rel target = $region22
      $region27: #{_lambda_.1} parent=19 // loop_exit
        _
    $region20: #{_lambda_.1} parent=4 // pred_fallthru
      _
    %p42 = pneg %p26
    // Predicated region
    $region28: #{_lambda_.1} parent=4 // pred_check
      _
    $region29: #{_lambda_.1} parent=4 // pred_check_branch
      %44 = sbr.rel (%p26) target = $region31
    $region30: #{_lambda_.1} parent=4 // pred_region
      %s45 = sand.u32 16, 7
    $region31: #{_lambda_.1} parent=4 // pred_fallthru
      _
  $region5: #{_lambda_.1} parent=0 // pred_fallthru
    _
  // Predicated region
  $region6: #{_lambda_.1} parent=0 // pred_check
    %p11 = pneg %p7
  $region7: #{_lambda_.1} parent=0 // pred_check_branch
    %13 = sbr.rel (%p11) target = $region9
  $region8: #{_lambda_.1} parent=0 // pred_region
    %s14 = sshllo.u32 0, 16
    loop: start=0, step=1, limit=1
    $region10: #{_lambda_.1} parent=8 // loop_pre_header
      _
    $region11: #{_lambda_.1} parent=8 // loop_header
      %s16 = sphi 0, %s20
      %p17 = scmp.ge.s32.totalorder %s16, 1
      %s21 = sphi %s0, %s0
      %s22 = sphi %s1, %s1
    $region12: #{_lambda_.1} parent=8 // loop_header_branch
      %19 = sbr.rel (%p17) target = $region16
    $region13: #{_lambda_.1} parent=8 // loop_body
      %v23 = vld [vmem:[%s21] sm:%s14]
      %24 = vst [vmem:[%s22] sm:%s14] %v23
    $region14: #{_lambda_.1} parent=8 // loop_footer
      %s20 = sadd.s32 1, %s16
    $region15: #{_lambda_.1} parent=8 // loop_footer_branch
      %15 = sbr.rel target = $region11
    $region16: #{_lambda_.1} parent=8 // loop_exit
      _
  $region9: #{_lambda_.1} parent=0 // pred_fallthru
    _
  // Predicated region
  $region32: #{_lambda_.1} parent=0 // pred_check
    _
  $region33: #{_lambda_.1} parent=0 // pred_check_branch
    %48 = sbr.rel (0) target = $region35
  $region34: #{_lambda_.1} parent=0 // pred_region
    %49 = vsyncadd [#allocation2], 256
  $region35: #{_lambda_.1} parent=0 // pred_fallthru
    _
  %s50 = smul.u32 1, 16
  %s51 = sshll.u32 %s50, 4
  %52 = dma.done [#allocation2], %s51
  %53 = vsyncmov [#allocation2]
  %s54 = vpop.sfrf %53
  %p55 = scmp.eq.s32.totalorder %s54, 0
  %p56 = pneg %p55
  %58 = shalt.err (%p56)

</llo_original>
